<compile_context>
chip_gen: v7x
topology: tpu7x:2x2x1
jax: 0.10.0
libtpu: 0.0.40
codegen_flags: <defaults>
</compile_context>

<pallas_src>
import functools

import jax
import jax.numpy as jnp
from jax.experimental import pallas as pl
from jax.experimental.pallas import tpu as pltpu

_VMEM_LIMIT = 48 * 1024 * 1024  # explicit scoped-VMEM budget (> defaults, < v7x physical)


def _round_up(x, m):
    return (x + m - 1) // m * m


def _sigmoid(x):
    # sigmoid with the divide replaced by an approx EUP reciprocal (relieves the single
    # EUP on v5e; exp + vrcp both live in the EUP slot, off the VALU critical path).
    return pl.reciprocal(1.0 + jnp.exp(-x), approx=True)


# ----------------------------------------------------------------------------- kernels

def _matmul_kernel(*refs, act, has_res, has_gate):
    # y = act((x [* gate]) @ w + shift) [+ residual]   (BN scale pre-folded into w)
    x_ref, w_ref, shift_ref = refs[0], refs[1], refs[2]
    i = 3
    gate_ref = None
    res_ref = None
    if has_gate:
        gate_ref = refs[i]; i += 1
    if has_res:
        res_ref = refs[i]; i += 1
    o_ref = refs[i]

    x = x_ref[0]                                             # (tr, K) bf16
    if has_gate:
        # per-batch, per-channel SE gate fused into the matmul prologue
        x = (x.astype(jnp.float32) * gate_ref[0]).astype(jnp.bfloat16)
    y = jnp.dot(x, w_ref[...], preferred_element_type=jnp.float32)
    y = y + shift_ref[...]
    if act == "swish":
        y = y * _sigmoid(y)
    if has_res:
        y = y + res_ref[0].astype(jnp.float32)
    o_ref[0] = y.astype(o_ref.dtype)


def matmul_shift_act(x, w, shift, act="none", residual=None, gate=None, tr=512):
    """Per-batch row-tiled (B, R, K) @ (K, N) matmul with folded-BN shift, optional
    swish, optional fused residual add and optional fused per-batch channel gate."""
    B, R, K = x.shape
    N = w.shape[1]
    tr = min(tr, _round_up(R, 8))
    Rp = _round_up(R, tr)
    if Rp != R:  # ragged row tail -> zero-pad instead of asserting
        x = jnp.pad(x, ((0, 0), (0, Rp - R), (0, 0)))
        if residual is not None:
            residual = jnp.pad(residual, ((0, 0), (0, Rp - R), (0, 0)))
    has_res = residual is not None
    has_gate = gate is not None

    in_specs = [
        pl.BlockSpec((1, tr, K), lambda b, r: (b, r, 0)),
        pl.BlockSpec((K, N), lambda b, r: (0, 0)),
        pl.BlockSpec((1, N), lambda b, r: (0, 0)),
    ]
    args = [x, w, shift]
    if has_gate:
        in_specs.append(pl.BlockSpec((1, 1, K), lambda b, r: (b, 0, 0)))
        args.append(gate)
    if has_res:
        in_specs.append(pl.BlockSpec((1, tr, N), lambda b, r: (b, r, 0)))
        args.append(residual)

    kernel = functools.partial(_matmul_kernel, act=act, has_res=has_res, has_gate=has_gate)
    cost = pl.CostEstimate(
        flops=2 * B * Rp * K * N,
        transcendentals=B * Rp * N if act == "swish" else 0,
        bytes_accessed=2 * B * Rp * (K + N) + 2 * K * N + 4 * N
        + (2 * B * Rp * N if has_res else 0) + (4 * B * K if has_gate else 0),
    )
    out = pl.pallas_call(
        kernel,
        out_shape=jax.ShapeDtypeStruct((B, Rp, N), jnp.bfloat16),
        grid=(B, Rp // tr),
        in_specs=in_specs,
        out_specs=pl.BlockSpec((1, tr, N), lambda b, r: (b, r, 0)),
        compiler_params=pltpu.CompilerParams(
            dimension_semantics=("parallel", "parallel"),
            vmem_limit_bytes=_VMEM_LIMIT),
        cost_estimate=cost,
    )(*args)
    return out[:, :R] if Rp != R else out


def _dw_se_kernel(*refs, stride, tr, oh, ow, h_in, w_in):
    # Fused per (batch, row-tile): depthwise 3x3 (unrolled 9-tap MAC with a small
    # row-chunk f32 accumulator) + folded-BN shift + swish + SE squeeze (global pool
    # accumulated across row tiles, gate emitted at the last tile).
    if stride == 1:
        (x_ref, wdw_ref, shift_ref, w1_ref, b1_ref, w2_ref, b2_ref,
         y_ref, g_ref, xs_ref, pool_ref) = refs
    else:
        (x_ref, wdw_ref, shift_ref, w1_ref, b1_ref, w2_ref, b2_ref,
         y_ref, g_ref, pool_ref) = refs
        xs_ref = None

    rt = pl.program_id(1)
    n_rt = pl.num_programs(1)
    ce = y_ref.shape[-1]

    @pl.when(rt == 0)
    def _init():
        pool_ref[...] = jnp.zeros_like(pool_ref)
        if stride == 1:
            # Build the zero-halo padded copy of this batch's activation once in VMEM;
            # it stays resident (scratch persists) for all row tiles of this batch.
            xs_ref[...] = jnp.zeros_like(xs_ref)
            xs_ref[1:h_in + 1, 1:w_in + 1, :] = x_ref[0]

    r0 = pl.multiple_of(rt * tr, tr)                         # first output row of this tile
    acc = jnp.zeros((tr, ow, ce), jnp.float32)
    for ki in range(3):
        if stride == 1:
            band = xs_ref[pl.ds(r0 + ki, tr), :, :]          # (tr, W+2, C), aligned minor dims
        for kj in range(3):
            k = ki * 3 + kj
            if stride == 1:
                tap = band[:, kj:kj + ow, :]
            else:
                # stride 2: phase-decomposed input -> contiguous slices only
                ph = (ki % 2) * 2 + (kj % 2)
                band2 = x_ref[0, ph, pl.ds(r0 + ki // 2, tr), :, :]
                c0 = kj // 2
                tap = band2[:, c0:c0 + ow, :]
            acc = acc + tap.astype(jnp.float32) * wdw_ref[k:k + 1, :]

    y = acc + shift_ref[...]
    y = y * _sigmoid(y)                                      # swish (f32, in registers)

    # SE squeeze: accumulate the spatial sum across row tiles
    pool_ref[...] += jnp.sum(y.reshape(tr * ow, ce), axis=0, keepdims=True)
    y_ref[0] = y.astype(y_ref.dtype)

    @pl.when(rt == n_rt - 1)
    def _gate():
        pooled = pool_ref[...] * (1.0 / float(oh * ow))      # (1, Ce)
        s = jnp.dot(pooled, w1_ref[...], preferred_element_type=jnp.float32) + b1_ref[...]
        s = s * _sigmoid(s)
        g = jnp.dot(s, w2_ref[...], preferred_element_type=jnp.float32) + b2_ref[...]
        g_ref[0] = _sigmoid(g)                               # applied in the projection matmul


def dwconv_se(x, w_dw, shift, w1, b1, w2, b2, stride):
    """Depthwise 3x3 (pad=1) + BN + swish + SE squeeze; returns ungated activation y
    plus the per-batch channel gate g (applied in the following projection matmul)."""
    B, H, W, C = x.shape
    OH = (H + 2 - 3) // stride + 1
    OW = (W + 2 - 3) // stride + 1
    Cr = w1.shape[1]

    # row-tile size: keep the chunk f32 accumulator <= ~16 vregs (64 KiB)
    tr = 1
    for cand in (8, 4, 2, 1):
        if OH % cand == 0 and cand * OW * C * 4 <= 64 * 1024:
            tr = cand
            break
    n_rt = OH // tr

    if stride == 1:
        x_in = x                                             # halo pad built in-kernel
        in_spec_x = pl.BlockSpec((1, H, W, C), lambda b, r: (b, 0, 0, 0))
        scratch = [pltpu.VMEM((H + 2, W + 2, C), x.dtype),   # padded activation
                   pltpu.VMEM((1, C), jnp.float32)]          # SE pool accumulator
    else:
        assert stride == 2 and (H + 2) % 2 == 0 and (W + 2) % 2 == 0
        # even/odd phase split: each 3x3 tap becomes a contiguous slice of one phase plane
        xp = jnp.pad(x, ((0, 0), (1, 1), (1, 1), (0, 0)))
        Hp, Wp = H + 2, W + 2
        phases = xp.reshape(B, Hp // 2, 2, Wp // 2, 2, C).transpose(0, 2, 4, 1, 3, 5)
        x_in = phases.reshape(B, 4, Hp // 2, Wp // 2, C)
        Hh, Wh = Hp // 2, Wp // 2
        in_spec_x = pl.BlockSpec((1, 4, Hh, Wh, C), lambda b, r: (b, 0, 0, 0, 0))
        scratch = [pltpu.VMEM((1, C), jnp.float32)]

    kernel = functools.partial(_dw_se_kernel, stride=stride, tr=tr, oh=OH, ow=OW,
                               h_in=H, w_in=W)
    cost = pl.CostEstimate(
        flops=B * OH * OW * C * 9 * 2 + 2 * B * 2 * C * Cr,
        transcendentals=B * (OH * OW * C + 2 * C + Cr),
        bytes_accessed=2 * int(x_in.size) + 2 * B * OH * OW * C + 4 * B * C
        + 4 * (10 * C + 2 * C * Cr),
    )
    y, g = pl.pallas_call(
        kernel,
        out_shape=(jax.ShapeDtypeStruct((B, OH, OW, C), jnp.bfloat16),
                   jax.ShapeDtypeStruct((B, 1, C), jnp.float32)),
        grid=(B, n_rt),
        in_specs=[
            in_spec_x,
            pl.BlockSpec((9, C), lambda b, r: (0, 0)),
            pl.BlockSpec((1, C), lambda b, r: (0, 0)),
            pl.BlockSpec((C, Cr), lambda b, r: (0, 0)),
            pl.BlockSpec((1, Cr), lambda b, r: (0, 0)),
            pl.BlockSpec((Cr, C), lambda b, r: (0, 0)),
            pl.BlockSpec((1, C), lambda b, r: (0, 0)),
        ],
        out_specs=(pl.BlockSpec((1, tr, OW, C), lambda b, r: (b, r, 0, 0)),
                   pl.BlockSpec((1, 1, C), lambda b, r: (b, 0, 0))),
        scratch_shapes=scratch,
        compiler_params=pltpu.CompilerParams(
            dimension_semantics=("parallel", "arbitrary"),
            vmem_limit_bytes=_VMEM_LIMIT),
        cost_estimate=cost,
    )(x_in, w_dw, shift, w1, b1, w2, b2)
    return y, g, OH, OW


def _gap_fc_kernel(x_ref, w_ref, b_ref, o_ref):
    # global average pool over spatial, then the replaced nn.Linear(num_ftrs, classes)
    x = x_ref[0].astype(jnp.float32)                         # (HW, C)
    pooled = jnp.sum(x, axis=0, keepdims=True) * (1.0 / float(x.shape[0]))
    o_ref[0] = jnp.dot(pooled, w_ref[...], preferred_element_type=jnp.float32) + b_ref[...]


def gap_fc(feat, w, b):
    B, HW, C = feat.shape
    Np = w.shape[1]                                          # lane-dense padded classes
    out = pl.pallas_call(
        _gap_fc_kernel,
        out_shape=jax.ShapeDtypeStruct((B, 1, Np), jnp.float32),
        grid=(B,),
        in_specs=[pl.BlockSpec((1, HW, C), lambda b: (b, 0, 0)),
                  pl.BlockSpec((C, Np), lambda b: (0, 0)),
                  pl.BlockSpec((1, Np), lambda b: (0, 0))],
        out_specs=pl.BlockSpec((1, 1, Np), lambda b: (b, 0, 0)),
        compiler_params=pltpu.CompilerParams(
            dimension_semantics=("parallel",),
            vmem_limit_bytes=_VMEM_LIMIT),
    )(feat, w, b)
    return out[:, 0]


# ----------------------------------------------------------------------------- glue

def im2col(x, kh, kw, stride, pad, k_pad_to=None):
    # only used for the tiny 3-channel stem (9*3 = 27 cols, padded to 32 for lane-dense
    # loads); wide-channel depthwise convs are fused in-kernel instead.
    B, H, W, C = x.shape
    xp = jnp.pad(x, ((0, 0), (pad, pad), (pad, pad), (0, 0)))
    OH = (H + 2 * pad - kh) // stride + 1
    OW = (W + 2 * pad - kw) // stride + 1
    cols = []
    for i in range(kh):
        for j in range(kw):
            cols.append(xp[:, i:i + stride * OH:stride, j:j + stride * OW:stride, :])
    cols = jnp.concatenate(cols, axis=-1)                    # (B, OH, OW, kh*kw*C)
    K = cols.shape[-1]
    if k_pad_to is not None and k_pad_to > K:
        cols = jnp.pad(cols, ((0, 0), (0, 0), (0, 0), (0, k_pad_to - K)))
    return cols, OH, OW


def mbconv(x, p, stride, residual):
    # MBConv: expand(1x1) -> [dw(3x3)+BN+swish+SE-squeeze fused] -> project(1x1) with
    # the SE gate and skip connection fused into the projection matmul.
    B, H, W, Cin = x.shape
    x_rows = x.reshape(B, H * W, Cin)
    y = matmul_shift_act(x_rows, p["exp_w"], p["exp_b"], act="swish")
    Ce = y.shape[-1]
    y, g, OH, OW = dwconv_se(y.reshape(B, H, W, Ce), p["dw_w"], p["dw_b"],
                             p["se_w1"], p["se_b1"], p["se_w2"], p["se_b2"], stride=stride)
    res = x_rows if residual else None
    out = matmul_shift_act(y.reshape(B, OH * OW, Ce), p["proj_w"], p["proj_b"],
                           act="none", residual=res, gate=g)
    return out.reshape(B, OH, OW, -1)


def effinet7_forward(image, params, classes=4):
    # image: (B, 3, H, W) NCHW, like the PyTorch module's input
    x = jnp.transpose(image, (0, 2, 3, 1)).astype(jnp.bfloat16)   # -> NHWC bf16

    # stem: conv3x3 stride 2 + BN + swish (im2col K padded to 32)
    B = x.shape[0]
    pcols, OH, OW = im2col(x, 3, 3, 2, 1, k_pad_to=32)
    y = matmul_shift_act(pcols.reshape(B, OH * OW, pcols.shape[-1]),
                         params["stem_w"], params["stem_b"], act="swish")
    x = y.reshape(B, OH, OW, -1)

    x = mbconv(x, params["blk1"], stride=1, residual=True)
    x = mbconv(x, params["blk2"], stride=2, residual=False)

    # head 1x1 conv + BN + swish
    B2, H2, W2, C2 = x.shape
    feat = matmul_shift_act(x.reshape(B2, H2 * W2, C2),
                            params["head_w"], params["head_b"], act="swish")

    # GAP + self.base_model._fc = nn.Linear(num_ftrs, classes, bias=True)
    logits = gap_fc(feat, params["fc_w"], params["fc_b"])
    return logits[:, :classes]                               # drop lane padding on host


# ----------------------------------------------------------------------------- params

def _p(key, shape, scale=0.05):
    return (scale * jax.random.normal(key, shape)).astype(jnp.float32)


def init_params(key, classes=4):
    ks = iter(jax.random.split(key, 64))
    # lane-dense (multiple-of-128) channel widths
    C_stem, C1, Ce, Cr, C2, C_head = 128, 128, 256, 32, 256, 512
    K_stem = 32                                              # 27 real taps, padded to 32
    classes_padded = 128

    def conv_bn(cin, cout):
        # fold BN scale into the conv weight on the host -> kernel epilogue is shift-only
        w = _p(next(ks), (cin, cout))
        s = 1.0 + _p(next(ks), (1, cout))
        b = _p(next(ks), (1, cout))
        return (w * s).astype(jnp.bfloat16), b

    def block(cin, cexp, cred, cout):
        exp_w, exp_b = conv_bn(cin, cexp)
        dw_w = _p(next(ks), (9, cexp))
        dw_s = 1.0 + _p(next(ks), (1, cexp))
        dw_b = _p(next(ks), (1, cexp))
        proj_w, proj_b = conv_bn(cexp, cout)
        return dict(
            exp_w=exp_w, exp_b=exp_b,
            dw_w=(dw_w * dw_s), dw_b=dw_b,                   # BN folded; f32 for VPU MAC
            se_w1=_p(next(ks), (cexp, cred)), se_b1=_p(next(ks), (1, cred)),
            se_w2=_p(next(ks), (cred, cexp)), se_b2=_p(next(ks), (1, cexp)),
            proj_w=proj_w, proj_b=proj_b,
        )

    stem_w, stem_b = conv_bn(K_stem, C_stem)                 # zero-padded K cols -> no effect
    head_w, head_b = conv_bn(C2, C_head)
    fc_w = _p(next(ks), (C_head, classes))
    fc_b = _p(next(ks), (1, classes))
    # pad the tiny classifier to a lane-dense 128-wide output; logits sliced on host
    fc_w = jnp.pad(fc_w, ((0, 0), (0, classes_padded - classes)))
    fc_b = jnp.pad(fc_b, ((0, 0), (0, classes_padded - classes)))

    return dict(
        stem_w=stem_w, stem_b=stem_b,
        blk1=block(C_stem, Ce, Cr, C1),
        blk2=block(C1, Ce, Cr, C2),
        head_w=head_w, head_b=head_b,
        fc_w=fc_w, fc_b=fc_b,
    )


# ----------------------------------------------------------------------------- main

if __name__ == "__main__":
    key = jax.random.PRNGKey(0)
    k_img, k_par = jax.random.split(key)
    classes = 4  # Plant Pathology 2020 has 4 classes
    image = jax.random.normal(k_img, (2, 3, 32, 32), dtype=jnp.float32)  # NCHW like PyTorch
    params = init_params(k_par, classes=classes)

    logits = effinet7_forward(image, params, classes=classes)
    logits = jax.block_until_ready(logits)
    assert logits.shape == (2, classes), logits.shape
    assert logits.dtype == jnp.float32
    assert bool(jnp.all(jnp.isfinite(logits)))
    print("KERNEL_OK")
</pallas_src>

<mosaic_0001>
module attributes {stable_mosaic.version = 11 : i64} {
  func.func @_matmul_kernel(%arg0: i32, %arg1: i32, %arg2: memref<1x256x32xbf16, #tpu.memory_space<vmem>>, %arg3: memref<32x128xbf16, #tpu.memory_space<vmem>>, %arg4: memref<1x128xf32, #tpu.memory_space<vmem>>, %arg5: memref<1x256x128xbf16, #tpu.memory_space<vmem>>) attributes {dimension_semantics = [#tpu.dimension_semantics<parallel>, #tpu.dimension_semantics<parallel>], iteration_bounds = array<i64: 2, 1>, scalar_prefetch = 0 : i64, scratch_operands = 0 : i64, tpu.core_type = #tpu.core_type<tc>, window_params = [{transform_indices = @transform_0, window_bounds = array<i64: 1, 256, 32>}, {pipeline_mode = #tpu.pipeline_mode<synchronous>, transform_indices = @transform_1, window_bounds = array<i64: 32, 128>}, {pipeline_mode = #tpu.pipeline_mode<synchronous>, transform_indices = @transform_2, window_bounds = array<i64: 1, 128>}, {transform_indices = @transform_3, window_bounds = array<i64: 1, 256, 128>}]} {
    %c0 = arith.constant 0 : index
    %c0_0 = arith.constant 0 : index
    %c0_1 = arith.constant 0 : index
    %0 = vector.load %arg2[%c0, %c0_0, %c0_1] : memref<1x256x32xbf16, #tpu.memory_space<vmem>>, vector<1x256x32xbf16>
    %1 = vector.shape_cast %0 : vector<1x256x32xbf16> to vector<256x32xbf16>
    %c0_2 = arith.constant 0 : index
    %c0_3 = arith.constant 0 : index
    %2 = vector.load %arg3[%c0_2, %c0_3] : memref<32x128xbf16, #tpu.memory_space<vmem>>, vector<32x128xbf16>
    %cst = arith.constant dense<0.000000e+00> : vector<256x128xf32>
    %3 = tpu.matmul %1, %2, %cst {dimension_numbers = #tpu.dot_dimension_numbers<[1], [0], [0], [1], [0, 0, 1, 1], [], []>} : vector<256x32xbf16>, vector<32x128xbf16>, vector<256x128xf32> -> vector<256x128xf32>
    %c0_4 = arith.constant 0 : index
    %c0_5 = arith.constant 0 : index
    %4 = vector.load %arg4[%c0_4, %c0_5] : memref<1x128xf32, #tpu.memory_space<vmem>>, vector<1x128xf32>
    %5 = vector.broadcast %4 : vector<1x128xf32> to vector<256x128xf32>
    %6 = arith.addf %3, %5 : vector<256x128xf32>
    %cst_6 = arith.constant 0.000000e+00 : f32
    %7 = vector.broadcast %cst_6 : f32 to vector<256x128xf32>
    %8 = arith.subf %7, %6 : vector<256x128xf32>
    %9 = math.exp %8 : vector<256x128xf32>
    %cst_7 = arith.constant 1.000000e+00 : f32
    %10 = vector.broadcast %cst_7 : f32 to vector<256x128xf32>
    %11 = arith.addf %10, %9 : vector<256x128xf32>
    %12 = tpu.reciprocal %11 {approx = true} : vector<256x128xf32> -> vector<256x128xf32>
    %13 = arith.mulf %6, %12 : vector<256x128xf32>
    %14 = arith.truncf %13 : vector<256x128xf32> to vector<256x128xbf16>
    %c0_8 = arith.constant 0 : index
    %c0_9 = arith.constant 0 : index
    %c0_10 = arith.constant 0 : index
    %15 = vector.load %arg5[%c0_8, %c0_9, %c0_10] : memref<1x256x128xbf16, #tpu.memory_space<vmem>>, vector<1x256x128xbf16>
    %16 = vector.shape_cast %15 : vector<1x256x128xbf16> to vector<256x128xbf16>
    %17 = vector.shape_cast %14 : vector<256x128xbf16> to vector<1x256x128xbf16>
    tpu.vector_store %arg5[%c0_8, %c0_9, %c0_10], %17 {strides = array<i32>} : memref<1x256x128xbf16, #tpu.memory_space<vmem>>, vector<1x256x128xbf16>,
    return
  }
  func.func @transform_0(%arg0: i32, %arg1: i32) -> (i32, i32, i32) {
    %c0_i32 = arith.constant 0 : i32
    %c0_i32_0 = arith.constant 0 : i32
    return %arg0, %arg1, %c0_i32 : i32, i32, i32
  }
  func.func @transform_1(%arg0: i32, %arg1: i32) -> (i32, i32) {
    %c0_i32 = arith.constant 0 : i32
    %c0_i32_0 = arith.constant 0 : i32
    %c0_i32_1 = arith.constant 0 : i32
    return %c0_i32, %c0_i32_0 : i32, i32
  }
  func.func @transform_2(%arg0: i32, %arg1: i32) -> (i32, i32) {
    %c0_i32 = arith.constant 0 : i32
    %c0_i32_0 = arith.constant 0 : i32
    %c0_i32_1 = arith.constant 0 : i32
    return %c0_i32, %c0_i32_0 : i32, i32
  }
  func.func @transform_3(%arg0: i32, %arg1: i32) -> (i32, i32, i32) {
    %c0_i32 = arith.constant 0 : i32
    %c0_i32_0 = arith.constant 0 : i32
    return %arg0, %arg1, %c0_i32 : i32, i32, i32
  }
}

</mosaic_0001>

<llo_original>
// kernel: tpu_custom_call.1
$region0: #{tpu_custom_call.1}
  #allocation0 [shape = 'u32[]', space=smem, size = 0x4, offset = 0x4, fixed_abs, tag = 'smem constant byte address 0x4 - core index']
  #allocation1 [shape = 'u32[144,128]{1,0:T(1,128)}', space=vmem, size = 0x12000, scoped, tag = 'internal scratch']
  %s0 = inlined_call_operand.vmem [shape: bf16[2,256,32], index: 0, kind: input, shape index: {}]
  %s1 = inlined_call_operand.vmem [shape: bf16[32,128], index: 1, kind: input, shape index: {}]
  %s2 = inlined_call_operand.vmem [shape: f32[1,128], index: 2, kind: input, shape index: {}]
  %s3 = inlined_call_operand.hbm [shape: bf16[2,256,128], index: 3, kind: output, shape index: {}]
  %s4 = sld [smem:[#allocation0]]
  $region45: #{tpu_custom_call.1} parent=0
    _
  %s6 = ssub.s32 1, %s4
  %s7 = scalar_select 0, %s6, %s4
  $region1: #{tpu_custom_call.1} parent=0
    #allocation2 [shape = 'u8[131072]{0}', space=vmem, size = 0x20000, scoped, tag = 'output window, operand 0']
    #allocation3 [shape = 's32[2]{0}', space=sflag, size = 0x8, scoped, tag = 'scoped memory for tpu_custom_call.1']
    %8 = vsyncpa [#allocation3], 0
    %s9 = scalar_lea.sflag [#allocation3], 1
    %10 = vsyncpa %s9, 0
    loop: start=0, step=1, limit=4
    $region2: #{tpu_custom_call.1} parent=1 // loop_pre_header
      _
    $region3: #{tpu_custom_call.1} parent=1 // loop_header
      %s12 = sphi 0, %s16
      %p13 = scmp.ge.s32.totalorder %s12, 4
      %s19 = sphi 0, %s31
      %s20 = sphi 0, %s27
      %s21 = sphi 0, %s19
      %s22 = sphi 0, %s20
      %s23 = sphi 0, %s21
      %s24 = sphi 0, %s22
      %s36 = sphi 0, %s38
      %s39 = sphi 0, %s36
      %s40 = sphi 0, %s39
      %s56 = sphi 0, %s40
      %s60 = sphi 0, %s60
      %s62 = sphi 0, %s60
      %s63 = sphi 0, %s62
      %s77 = sphi 0, %s63
      %s81 = sphi 0, %s81
      %s83 = sphi 0, %s81
      %s84 = sphi 0, %s83
      %s98 = sphi 0, %s84
      %s106 = sphi 0, %s108
      %s109 = sphi 0, %s106
      %s110 = sphi 0, %s109
      %s126 = sphi 0, %s110
    $region4: #{tpu_custom_call.1} parent=1 // loop_header_branch
      %15 = sbr.rel (%p13) target = $region8
    $region5: #{tpu_custom_call.1} parent=1 // loop_body
      %s17 = ssub.s32 %s12, 1
      %s18 = ssub.s32 %s12, 2
      %s25 = sadd.s32 1, %s20
      %p26 = scmp.ge.s32.totalorder %s25, 1
      %s27 = scalar_select %p26, 0, %s25
      %s28 = sadd.s32 1, %s19
      %s29 = scalar_select %p26, %s28, %s19
      %p30 = scmp.ge.s32.totalorder %s29, 2
      %s31 = scalar_select %p30, 0, %s29
      %s32 = ssub.s32 %s19, %s31
      %s33 = ssub.s32 %s20, %s27
      %s34 = sor.u32 %s32, %s33
      %p35 = scmp.eq.s32.totalorder %s34, 0
      %s37 = sadd.s32 %s36, 1
      %s38 = scalar_select %p35, %s36, %s37
      %p41 = pneg %p35
      %p42 = scmp.eq.s32.totalorder %s12, 1
      %p43 = por %p41, %p42
      %p44 = scmp.ne.s32.totalorder %s36, %s39
      %p45 = scmp.eq.s32.totalorder %s12, 0
      %p46 = por %p44, %p45
      %p47 = scmp.ne.s32.totalorder %s36, %s39
      %p48 = scmp.eq.s32.totalorder %s17, 1
      %p49 = por %p47, %p48
      %p50 = scmp.ne.s32.totalorder %s39, %s40
      %p51 = scmp.eq.s32.totalorder %s17, 0
      %p52 = por %p50, %p51
      %p53 = scmp.ne.s32.totalorder %s39, %s40
      %p54 = scmp.eq.s32.totalorder %s18, 1
      %p55 = por %p53, %p54
      %p57 = scmp.ne.s32.totalorder %s40, %s56
      %p58 = scmp.eq.s32.totalorder %s18, 0
      %p59 = por %p57, %p58
      %s61 = sadd.s32 %s60, 1
      %p64 = scmp.eq.s32.totalorder %s12, 1
      %p65 = scmp.ne.s32.totalorder %s60, %s62
      %p66 = scmp.eq.s32.totalorder %s12, 0
      %p67 = por %p65, %p66
      %p68 = scmp.ne.s32.totalorder %s60, %s62
      %p69 = scmp.eq.s32.totalorder %s17, 1
      %p70 = por %p68, %p69
      %p71 = scmp.ne.s32.totalorder %s62, %s63
      %p72 = scmp.eq.s32.totalorder %s17, 0
      %p73 = por %p71, %p72
      %p74 = scmp.ne.s32.totalorder %s62, %s63
      %p75 = scmp.eq.s32.totalorder %s18, 1
      %p76 = por %p74, %p75
      %p78 = scmp.ne.s32.totalorder %s63, %s77
      %p79 = scmp.eq.s32.totalorder %s18, 0
      %p80 = por %p78, %p79
      %s82 = sadd.s32 %s81, 1
      %p85 = scmp.eq.s32.totalorder %s12, 1
      %p86 = scmp.ne.s32.totalorder %s81, %s83
      %p87 = scmp.eq.s32.totalorder %s12, 0
      %p88 = por %p86, %p87
      %p89 = scmp.ne.s32.totalorder %s81, %s83
      %p90 = scmp.eq.s32.totalorder %s17, 1
      %p91 = por %p89, %p90
      %p92 = scmp.ne.s32.totalorder %s83, %s84
      %p93 = scmp.eq.s32.totalorder %s17, 0
      %p94 = por %p92, %p93
      %p95 = scmp.ne.s32.totalorder %s83, %s84
      %p96 = scmp.eq.s32.totalorder %s18, 1
      %p97 = por %p95, %p96
      %p99 = scmp.ne.s32.totalorder %s84, %s98
      %p100 = scmp.eq.s32.totalorder %s18, 0
      %p101 = por %p99, %p100
      %s102 = ssub.s32 %s19, %s31
      %s103 = ssub.s32 %s20, %s27
      %s104 = sor.u32 %s102, %s103
      %p105 = scmp.eq.s32.totalorder %s104, 0
      %s107 = sadd.s32 %s106, 1
      %s108 = scalar_select %p105, %s106, %s107
      %p111 = pneg %p105
      %p112 = scmp.eq.s32.totalorder %s12, 1
      %p113 = por %p111, %p112
      %p114 = scmp.ne.s32.totalorder %s106, %s109
      %p115 = scmp.eq.s32.totalorder %s12, 0
      %p116 = por %p114, %p115
      %p117 = scmp.ne.s32.totalorder %s106, %s109
      %p118 = scmp.eq.s32.totalorder %s17, 1
      %p119 = por %p117, %p118
      %p120 = scmp.ne.s32.totalorder %s109, %s110
      %p121 = scmp.eq.s32.totalorder %s17, 0
      %p122 = por %p120, %p121
      %p123 = scmp.ne.s32.totalorder %s109, %s110
      %p124 = scmp.eq.s32.totalorder %s18, 1
      %p125 = por %p123, %p124
      %p127 = scmp.ne.s32.totalorder %s110, %s126
      %p128 = scmp.eq.s32.totalorder %s18, 0
      %p129 = por %p127, %p128
      %p130 = scmp.le.s32.totalorder 1, %s12
      %p131 = scmp.lt.s32.totalorder %s12, 3
      %p132 = pnand %p130, %p131
      %p133 = pneg %p132
      // Predicated region
      $region9: #{tpu_custom_call.1} parent=5 // pred_check
        _
      $region10: #{tpu_custom_call.1} parent=5 // pred_check_branch
        %135 = sbr.rel (%p132) target = $region12
      $region11: #{tpu_custom_call.1} parent=5 // pred_region
        %s136 = ssub.s32 %s12, 1
        // Predicated region
        $region13: #{tpu_custom_call.1} parent=11 // pred_check
          %p137 = pneg %p73
        $region14: #{tpu_custom_call.1} parent=11 // pred_check_branch
          %139 = sbr.rel (%p137) target = $region16
        $region15: #{tpu_custom_call.1} parent=11 // pred_region
          _
        $region16: #{tpu_custom_call.1} parent=11 // pred_fallthru
          _
        // Predicated region
        $region17: #{tpu_custom_call.1} parent=11 // pred_check
          %p140 = pneg %p94
        $region18: #{tpu_custom_call.1} parent=11 // pred_check_branch
          %142 = sbr.rel (%p140) target = $region20
        $region19: #{tpu_custom_call.1} parent=11 // pred_region
          _
        $region20: #{tpu_custom_call.1} parent=11 // pred_fallthru
          _
      $region12: #{tpu_custom_call.1} parent=5 // pred_fallthru
        _
      %p143 = scmp.lt.s32.totalorder %s12, 2
      // Predicated region
      $region21: #{tpu_custom_call.1} parent=5 // pred_check
        %p144 = pneg %p143
      $region22: #{tpu_custom_call.1} parent=5 // pred_check_branch
        %146 = sbr.rel (%p144) target = $region24
      $region23: #{tpu_custom_call.1} parent=5 // pred_region
        // Predicated region
        $region25: #{tpu_custom_call.1} parent=23 // pred_check
          %p147 = pneg %p46
        $region26: #{tpu_custom_call.1} parent=23 // pred_check_branch
          %149 = sbr.rel (%p147) target = $region28
        $region27: #{tpu_custom_call.1} parent=23 // pred_region
          %s150 = smul.u32 32, %s20
          %p151 = scmp.lt.s32.totalorder %s19, 1
          %s152 = scalar_select %p151, %s19, 1
          %p153 = scmp.lt.s32.totalorder %s150, 31
          %s154 = scalar_select %p153, %s150, 31
          %s155 = smul.addr %s152, 32
          %s156 = sadd.s32 %s154, %s155
          %s157 = smul.addr %s156, 4
          %s158 = scalar_lea.vmem %s0, %s157
          %s159 = smul.u32 32, %s20
        $region28: #{tpu_custom_call.1} parent=23 // pred_fallthru
          _
      $region24: #{tpu_custom_call.1} parent=5 // pred_fallthru
        _
      %p160 = scmp.le.s32.totalorder 1, %s12
      %p161 = scmp.lt.s32.totalorder %s12, 3
      %p162 = pnand %p160, %p161
      %p163 = pneg %p162
      // Predicated region
      $region29: #{tpu_custom_call.1} parent=5 // pred_check
        _
      $region30: #{tpu_custom_call.1} parent=5 // pred_check_branch
        %165 = sbr.rel (%p162) target = $region32
      $region31: #{tpu_custom_call.1} parent=5 // pred_region
        %s166 = ssub.s32 %s12, 1
        %s167 = smul.u32 32, %s22
        %p168 = scmp.lt.s32.totalorder %s21, 1
        %s169 = scalar_select %p168, %s21, 1
        %p170 = scmp.lt.s32.totalorder %s167, 31
        %s171 = scalar_select %p170, %s167, 31
        %s172 = smul.addr %s169, 32
        %s173 = sadd.s32 %s171, %s172
        %s174 = smul.addr %s173, 4
        %s175 = scalar_lea.vmem %s0, %s174
        %p176 = pneg %p52
        %p177 = pneg %p49
        %p178 = pneg %p73
        %p179 = pneg %p70
        %p180 = pneg %p94
        %p181 = pneg %p91
        %p182 = pneg %p122
        %p183 = pneg %p119
        %s184 = sand.u32 %s109, 1
        %s185 = scalar_lea.sflag [#allocation3], %s184
        %s186 = sand.u32 %s109, 1
        %s187 = smul.addr %s186, 128
        %s188 = scalar_lea.vmem [#allocation2], %s187
        %s189 = smul.u32 32, %s22
        %p190 = scmp.lt.s32.totalorder %s21, 1
        %s191 = scalar_select %p190, %s21, 1
        %p192 = scmp.lt.s32.totalorder %s189, 31
        %s193 = scalar_select %p192, %s189, 31
        %s194 = smul.addr %s191, 32
        %s195 = sadd.s32 %s193, %s194
        %s196 = smul.addr %s195, 4
        %s197 = scalar_lea.vmem %s0, %s196
        %s198 = smul.u32 32, %s22
        %s199 = smul.u32 32, %s22
        %v201 = vld [vmem:[%s197] sm:$0xf]
        %v202 = vld [vmem:[%s197 + $0x4] sm:$0xf]
        %v203 = vld [vmem:[%s197 + $0x8] sm:$0xf]
        %v204 = vld [vmem:[%s197 + $0xc] sm:$0xf]
        %v205 = vld [vmem:[%s197 + $0x10] sm:$0xf]
        %v206 = vld [vmem:[%s197 + $0x14] sm:$0xf]
        %v207 = vld [vmem:[%s197 + $0x18] sm:$0xf]
        %v208 = vld [vmem:[%s197 + $0x1c] sm:$0xf]
        %v209 = vld [vmem:[%s197 + $0x20] sm:$0xf]
        %v210 = vld [vmem:[%s197 + $0x24] sm:$0xf]
        %v211 = vld [vmem:[%s197 + $0x28] sm:$0xf]
        %v212 = vld [vmem:[%s197 + $0x2c] sm:$0xf]
        %v213 = vld [vmem:[%s197 + $0x30] sm:$0xf]
        %v214 = vld [vmem:[%s197 + $0x34] sm:$0xf]
        %v215 = vld [vmem:[%s197 + $0x38] sm:$0xf]
        %v216 = vld [vmem:[%s197 + $0x3c] sm:$0xf]
        %v217 = vld [vmem:[%s197 + $0x40] sm:$0xf]
        %v218 = vld [vmem:[%s197 + $0x44] sm:$0xf]
        %v219 = vld [vmem:[%s197 + $0x48] sm:$0xf]
        %v220 = vld [vmem:[%s197 + $0x4c] sm:$0xf]
        %v221 = vld [vmem:[%s197 + $0x50] sm:$0xf]
        %v222 = vld [vmem:[%s197 + $0x54] sm:$0xf]
        %v223 = vld [vmem:[%s197 + $0x58] sm:$0xf]
        %v224 = vld [vmem:[%s197 + $0x5c] sm:$0xf]
        %v225 = vld [vmem:[%s197 + $0x60] sm:$0xf]
        %v226 = vld [vmem:[%s197 + $0x64] sm:$0xf]
        %v227 = vld [vmem:[%s197 + $0x68] sm:$0xf]
        %v228 = vld [vmem:[%s197 + $0x6c] sm:$0xf]
        %v229 = vld [vmem:[%s197 + $0x70] sm:$0xf]
        %v230 = vld [vmem:[%s197 + $0x74] sm:$0xf]
        %v231 = vld [vmem:[%s197 + $0x78] sm:$0xf]
        %v232 = vld [vmem:[%s197 + $0x7c] sm:$0xf]
        %v233 = vld [vmem:[%s1] sm:$0xf]
        %v234 = vld [vmem:[%s1 + $0x4] sm:$0xf]
        %v235 = vld [vmem:[%s1 + $0x8] sm:$0xf]
        %v236 = vld [vmem:[%s1 + $0xc] sm:$0xf]
        %v237 = vld [vmem:[%s2] sm:$0x1]
        %v239 = vlaneseq
        %v240 = vshrl.u32 %v239, 7
        %v241 = vsub.s32 0, %v240
        %v242 = vrot.slane %v237, %v241
        %v276 = vunpack.c.l.b16 %v201
        %v277 = vunpack.c.l.b16 %v202
        %v278 = vunpack.c.l.b16 %v203
        %v279 = vunpack.c.l.b16 %v204
        %v280 = vunpack.c.l.b16 %v205
        %v281 = vunpack.c.l.b16 %v206
        %v282 = vunpack.c.l.b16 %v207
        %v283 = vunpack.c.l.b16 %v208
        %v284 = vunpack.c.l.b16 %v209
        %v285 = vunpack.c.l.b16 %v210
        %v286 = vunpack.c.l.b16 %v211
        %v287 = vunpack.c.l.b16 %v212
        %v288 = vunpack.c.l.b16 %v213
        %v289 = vunpack.c.l.b16 %v214
        %v290 = vunpack.c.l.b16 %v215
        %v291 = vunpack.c.l.b16 %v216
        %v292 = vunpack.c.l.b16 %v217
        %v293 = vunpack.c.l.b16 %v218
        %v294 = vunpack.c.l.b16 %v219
        %v295 = vunpack.c.l.b16 %v220
        %v296 = vunpack.c.l.b16 %v221
        %v297 = vunpack.c.l.b16 %v222
        %v298 = vunpack.c.l.b16 %v223
        %v299 = vunpack.c.l.b16 %v224
        %v300 = vunpack.c.l.b16 %v225
        %v301 = vunpack.c.l.b16 %v226
        %v302 = vunpack.c.l.b16 %v227
        %v303 = vunpack.c.l.b16 %v228
        %v304 = vunpack.c.l.b16 %v229
        %v305 = vunpack.c.l.b16 %v230
        %v306 = vunpack.c.l.b16 %v231
        %v307 = vunpack.c.l.b16 %v232
        %v308 = vpack.c.b16 %v277, %v276
        %v309 = vpack.c.b16 %v279, %v278
        %v310 = vpack.c.b16 %v281, %v280
        %v311 = vpack.c.b16 %v283, %v282
        %v312 = vpack.c.b16 %v285, %v284
        %v313 = vpack.c.b16 %v287, %v286
        %v314 = vpack.c.b16 %v289, %v288
        %v315 = vpack.c.b16 %v291, %v290
        %v316 = vpack.c.b16 %v293, %v292
        %v317 = vpack.c.b16 %v295, %v294
        %v318 = vpack.c.b16 %v297, %v296
        %v319 = vpack.c.b16 %v299, %v298
        %v320 = vpack.c.b16 %v301, %v300
        %v321 = vpack.c.b16 %v303, %v302
        %v322 = vpack.c.b16 %v305, %v304
        %v323 = vpack.c.b16 %v307, %v306
        %v328 = vunpack.c.l.b16 %v233
        %v329 = vunpack.c.l.b16 %v234
        %v330 = vunpack.c.l.b16 %v235
        %v331 = vunpack.c.l.b16 %v236
        %v332 = vpack.c.b16 %v329, %v328
        %v333 = vpack.c.b16 %v331, %v330
        %vm336 = vcmask 261120
        %v338 = vsel %vm336, %v308, 0
        %v341 = vsel %vm336, %v309, 0
        %v344 = vsel %vm336, %v310, 0
        %v347 = vsel %vm336, %v311, 0
        %v350 = vsel %vm336, %v312, 0
        %v353 = vsel %vm336, %v313, 0
        %v356 = vsel %vm336, %v314, 0
        %v359 = vsel %vm336, %v315, 0
        %v362 = vsel %vm336, %v316, 0
        %v365 = vsel %vm336, %v317, 0
        %v368 = vsel %vm336, %v318, 0
        %v371 = vsel %vm336, %v319, 0
        %v374 = vsel %vm336, %v320, 0
        %v377 = vsel %vm336, %v321, 0
        %v380 = vsel %vm336, %v322, 0
        %v383 = vsel %vm336, %v323, 0
        %385 = vmatprep.subr.bf16.mxu0 0
        %386 = vmatpush1.bf16.msra.mxu0 %v332
        %387 = vmatprep.subr.bf16.mxu0 0
        %388 = vmatpush1.bf16.msra.mxu0 %v333
        %389 = vmatprep.subr.bf16.mxu0 0
        %390 = vmatpush1.bf16.msra.mxu0 0
        %391 = vmatprep.subr.bf16.mxu0 0
        %392 = vmatpush1.bf16.msra.mxu0 0
        %393 = vmatprep.subr.bf16.mxu0 0
        %394 = vmatpush1.bf16.msra.mxu0 0
        %395 = vmatprep.subr.bf16.mxu0 0
        %396 = vmatpush1.bf16.msra.mxu0 0
        %397 = vmatprep.subr.bf16.mxu0 0
        %398 = vmatpush1.bf16.msra.mxu0 0
        %399 = vmatprep.subr.bf16.mxu0 0
        %400 = vmatpush1.bf16.msra.mxu0 0
        %401 = vmatprep.subr.bf16.mxu0 0
        %402 = vmatpush1.bf16.msra.mxu0 0
        %403 = vmatprep.subr.bf16.mxu0 0
        %404 = vmatpush1.bf16.msra.mxu0 0
        %405 = vmatprep.subr.bf16.mxu0 0
        %406 = vmatpush1.bf16.msra.mxu0 0
        %407 = vmatprep.subr.bf16.mxu0 0
        %408 = vmatpush1.bf16.msra.mxu0 0
        %409 = vmatprep.subr.bf16.mxu0 0
        %410 = vmatpush1.bf16.msra.mxu0 0
        %411 = vmatprep.subr.bf16.mxu0 0
        %412 = vmatpush1.bf16.msra.mxu0 0
        %413 = vmatprep.subr.bf16.mxu0 0
        %414 = vmatpush1.bf16.msra.mxu0 0
        %415 = vmatprep.subr.bf16.mxu0 0
        %416 = vmatpush1.bf16.msra.mxu0 0
        %417 = vmatprep.mubr.bf16.mxu0 0
        %418 = vmatmul.mubr.bf16.gmra.mrb[0].mxu0 %v338
        %v419 = vpop.f32.mrb[0].mxu0
        %v420 = vadd.f32 %v242, %v419
        %v421 = vpop.f32.mrb[0].mxu0
        %v422 = vpop.f32.mrb[0].mxu0
        %v423 = vadd.f32 %v242, %v422
        %v424 = vpop.f32.mrb[0].mxu0
        %425 = vmatprep.mubr.bf16.mxu0 0
        %426 = vmatmul.mubr.bf16.gmra.mrb[0].mxu0 %v341
        %v427 = vpop.f32.mrb[0].mxu0
        %v428 = vadd.f32 %v242, %v427
        %v429 = vpop.f32.mrb[0].mxu0
        %v430 = vpop.f32.mrb[0].mxu0
        %v431 = vadd.f32 %v242, %v430
        %v432 = vpop.f32.mrb[0].mxu0
        %433 = vmatprep.mubr.bf16.mxu0 0
        %434 = vmatmul.mubr.bf16.gmra.mrb[0].mxu0 %v344
        %v435 = vpop.f32.mrb[0].mxu0
        %v436 = vadd.f32 %v242, %v435
        %v437 = vpop.f32.mrb[0].mxu0
        %v438 = vpop.f32.mrb[0].mxu0
        %v439 = vadd.f32 %v242, %v438
        %v440 = vpop.f32.mrb[0].mxu0
        %441 = vmatprep.mubr.bf16.mxu0 0
        %442 = vmatmul.mubr.bf16.gmra.mrb[0].mxu0 %v347
        %v443 = vpop.f32.mrb[0].mxu0
        %v444 = vadd.f32 %v242, %v443
        %v445 = vpop.f32.mrb[0].mxu0
        %v446 = vpop.f32.mrb[0].mxu0
        %v447 = vadd.f32 %v242, %v446
        %v448 = vpop.f32.mrb[0].mxu0
        %449 = vmatprep.mubr.bf16.mxu0 0
        %450 = vmatmul.mubr.bf16.gmra.mrb[0].mxu0 %v350
        %v451 = vpop.f32.mrb[0].mxu0
        %v452 = vadd.f32 %v242, %v451
        %v453 = vpop.f32.mrb[0].mxu0
        %v454 = vpop.f32.mrb[0].mxu0
        %v455 = vadd.f32 %v242, %v454
        %v456 = vpop.f32.mrb[0].mxu0
        %457 = vmatprep.mubr.bf16.mxu0 0
        %458 = vmatmul.mubr.bf16.gmra.mrb[0].mxu0 %v353
        %v459 = vpop.f32.mrb[0].mxu0
        %v460 = vadd.f32 %v242, %v459
        %v461 = vpop.f32.mrb[0].mxu0
        %v462 = vpop.f32.mrb[0].mxu0
        %v463 = vadd.f32 %v242, %v462
        %v464 = vpop.f32.mrb[0].mxu0
        %465 = vmatprep.mubr.bf16.mxu0 0
        %466 = vmatmul.mubr.bf16.gmra.mrb[0].mxu0 %v356
        %v467 = vpop.f32.mrb[0].mxu0
        %v468 = vadd.f32 %v242, %v467
        %v469 = vpop.f32.mrb[0].mxu0
        %v470 = vpop.f32.mrb[0].mxu0
        %v471 = vadd.f32 %v242, %v470
        %v472 = vpop.f32.mrb[0].mxu0
        %473 = vmatprep.mubr.bf16.mxu0 0
        %474 = vmatmul.mubr.bf16.gmra.mrb[0].mxu0 %v359
        %v475 = vpop.f32.mrb[0].mxu0
        %v476 = vadd.f32 %v242, %v475
        %v477 = vpop.f32.mrb[0].mxu0
        %v478 = vpop.f32.mrb[0].mxu0
        %v479 = vadd.f32 %v242, %v478
        %v480 = vpop.f32.mrb[0].mxu0
        %481 = vmatprep.mubr.bf16.mxu0 0
        %482 = vmatmul.mubr.bf16.gmra.mrb[0].mxu0 %v362
        %v483 = vpop.f32.mrb[0].mxu0
        %v484 = vadd.f32 %v242, %v483
        %v485 = vpop.f32.mrb[0].mxu0
        %v486 = vpop.f32.mrb[0].mxu0
        %v487 = vadd.f32 %v242, %v486
        %v488 = vpop.f32.mrb[0].mxu0
        %489 = vmatprep.mubr.bf16.mxu0 0
        %490 = vmatmul.mubr.bf16.gmra.mrb[0].mxu0 %v365
        %v491 = vpop.f32.mrb[0].mxu0
        %v492 = vadd.f32 %v242, %v491
        %v493 = vpop.f32.mrb[0].mxu0
        %v494 = vpop.f32.mrb[0].mxu0
        %v495 = vadd.f32 %v242, %v494
        %v496 = vpop.f32.mrb[0].mxu0
        %497 = vmatprep.mubr.bf16.mxu0 0
        %498 = vmatmul.mubr.bf16.gmra.mrb[0].mxu0 %v368
        %v499 = vpop.f32.mrb[0].mxu0
        %v500 = vadd.f32 %v242, %v499
        %v501 = vpop.f32.mrb[0].mxu0
        %v502 = vpop.f32.mrb[0].mxu0
        %v503 = vadd.f32 %v242, %v502
        %v504 = vpop.f32.mrb[0].mxu0
        %505 = vmatprep.mubr.bf16.mxu0 0
        %506 = vmatmul.mubr.bf16.gmra.mrb[0].mxu0 %v371
        %v507 = vpop.f32.mrb[0].mxu0
        %v508 = vadd.f32 %v242, %v507
        %v509 = vpop.f32.mrb[0].mxu0
        %v510 = vpop.f32.mrb[0].mxu0
        %v511 = vadd.f32 %v242, %v510
        %v512 = vpop.f32.mrb[0].mxu0
        %513 = vmatprep.mubr.bf16.mxu0 0
        %514 = vmatmul.mubr.bf16.gmra.mrb[0].mxu0 %v374
        %v515 = vpop.f32.mrb[0].mxu0
        %v516 = vadd.f32 %v242, %v515
        %v517 = vpop.f32.mrb[0].mxu0
        %v518 = vpop.f32.mrb[0].mxu0
        %v519 = vadd.f32 %v242, %v518
        %v520 = vpop.f32.mrb[0].mxu0
        %521 = vmatprep.mubr.bf16.mxu0 0
        %522 = vmatmul.mubr.bf16.gmra.mrb[0].mxu0 %v377
        %v523 = vpop.f32.mrb[0].mxu0
        %v524 = vadd.f32 %v242, %v523
        %v525 = vpop.f32.mrb[0].mxu0
        %v526 = vpop.f32.mrb[0].mxu0
        %v527 = vadd.f32 %v242, %v526
        %v528 = vpop.f32.mrb[0].mxu0
        %529 = vmatprep.mubr.bf16.mxu0 0
        %530 = vmatmul.mubr.bf16.gmra.mrb[0].mxu0 %v380
        %v531 = vpop.f32.mrb[0].mxu0
        %v532 = vadd.f32 %v242, %v531
        %v533 = vpop.f32.mrb[0].mxu0
        %v534 = vpop.f32.mrb[0].mxu0
        %v535 = vadd.f32 %v242, %v534
        %v536 = vpop.f32.mrb[0].mxu0
        %537 = vmatprep.mubr.bf16.mxu0 0
        %538 = vmatmul.mubr.bf16.gmra.mrb[0].mxu0 %v383
        %v539 = vpop.f32.mrb[0].mxu0
        %v540 = vadd.f32 %v242, %v539
        %v541 = vpop.f32.mrb[0].mxu0
        %v542 = vpop.f32.mrb[0].mxu0
        %v543 = vadd.f32 %v242, %v542
        %v544 = vpop.f32.mrb[0].mxu0
        %545 = vdwg.mxu0
        %v546 = vsub.f32 0.0, %v420
        %v547 = vsub.f32 0.0, %v423
        %v548 = vsub.f32 0.0, %v428
        %v549 = vsub.f32 0.0, %v431
        %v550 = vsub.f32 0.0, %v436
        %v551 = vsub.f32 0.0, %v439
        %v552 = vsub.f32 0.0, %v444
        %v553 = vsub.f32 0.0, %v447
        %v554 = vsub.f32 0.0, %v452
        %v555 = vsub.f32 0.0, %v455
        %v556 = vsub.f32 0.0, %v460
        %v557 = vsub.f32 0.0, %v463
        %v558 = vsub.f32 0.0, %v468
        %v559 = vsub.f32 0.0, %v471
        %v560 = vsub.f32 0.0, %v476
        %v561 = vsub.f32 0.0, %v479
        %v562 = vsub.f32 0.0, %v484
        %v563 = vsub.f32 0.0, %v487
        %v564 = vsub.f32 0.0, %v492
        %v565 = vsub.f32 0.0, %v495
        %v566 = vsub.f32 0.0, %v500
        %v567 = vsub.f32 0.0, %v503
        %v568 = vsub.f32 0.0, %v508
        %v569 = vsub.f32 0.0, %v511
        %v570 = vsub.f32 0.0, %v516
        %v571 = vsub.f32 0.0, %v519
        %v572 = vsub.f32 0.0, %v524
        %v573 = vsub.f32 0.0, %v527
        %v574 = vsub.f32 0.0, %v532
        %v575 = vsub.f32 0.0, %v535
        %v576 = vsub.f32 0.0, %v540
        %v577 = vsub.f32 0.0, %v543
        %v578 = vmul.f32 %v546, 1.442695
        %v579 = vpow.pop %v578
        %v580 = vmul.f32 %v547, 1.442695
        %v581 = vpow.pop %v580
        %v582 = vmul.f32 %v548, 1.442695
        %v583 = vpow.pop %v582
        %v584 = vmul.f32 %v549, 1.442695
        %v585 = vpow.pop %v584
        %v586 = vmul.f32 %v550, 1.442695
        %v587 = vpow.pop %v586
        %v588 = vmul.f32 %v551, 1.442695
        %v589 = vpow.pop %v588
        %v590 = vmul.f32 %v552, 1.442695
        %v591 = vpow.pop %v590
        %v592 = vmul.f32 %v553, 1.442695
        %v593 = vpow.pop %v592
        %v594 = vmul.f32 %v554, 1.442695
        %v595 = vpow.pop %v594
        %v596 = vmul.f32 %v555, 1.442695
        %v597 = vpow.pop %v596
        %v598 = vmul.f32 %v556, 1.442695
        %v599 = vpow.pop %v598
        %v600 = vmul.f32 %v557, 1.442695
        %v601 = vpow.pop %v600
        %v602 = vmul.f32 %v558, 1.442695
        %v603 = vpow.pop %v602
        %v604 = vmul.f32 %v559, 1.442695
        %v605 = vpow.pop %v604
        %v606 = vmul.f32 %v560, 1.442695
        %v607 = vpow.pop %v606
        %v608 = vmul.f32 %v561, 1.442695
        %v609 = vpow.pop %v608
        %v610 = vmul.f32 %v562, 1.442695
        %v611 = vpow.pop %v610
        %v612 = vmul.f32 %v563, 1.442695
        %v613 = vpow.pop %v612
        %v614 = vmul.f32 %v564, 1.442695
        %v615 = vpow.pop %v614
        %v616 = vmul.f32 %v565, 1.442695
        %v617 = vpow.pop %v616
        %v618 = vmul.f32 %v566, 1.442695
        %v619 = vpow.pop %v618
        %v620 = vmul.f32 %v567, 1.442695
        %v621 = vpow.pop %v620
        %v622 = vmul.f32 %v568, 1.442695
        %v623 = vpow.pop %v622
        %v624 = vmul.f32 %v569, 1.442695
        %v625 = vpow.pop %v624
        %v626 = vmul.f32 %v570, 1.442695
        %v627 = vpow.pop %v626
        %v628 = vmul.f32 %v571, 1.442695
        %v629 = vpow.pop %v628
        %v630 = vmul.f32 %v572, 1.442695
        %v631 = vpow.pop %v630
        %v632 = vmul.f32 %v573, 1.442695
        %v633 = vpow.pop %v632
        %v634 = vmul.f32 %v574, 1.442695
        %v635 = vpow.pop %v634
        %v636 = vmul.f32 %v575, 1.442695
        %v637 = vpow.pop %v636
        %v638 = vmul.f32 %v576, 1.442695
        %v639 = vpow.pop %v638
        %v640 = vmul.f32 %v577, 1.442695
        %v641 = vpow.pop %v640
        %v642 = vadd.f32 %v579, 1.0
        %v643 = vadd.f32 %v581, 1.0
        %v644 = vadd.f32 %v583, 1.0
        %v645 = vadd.f32 %v585, 1.0
        %v646 = vadd.f32 %v587, 1.0
        %v647 = vadd.f32 %v589, 1.0
        %v648 = vadd.f32 %v591, 1.0
        %v649 = vadd.f32 %v593, 1.0
        %v650 = vadd.f32 %v595, 1.0
        %v651 = vadd.f32 %v597, 1.0
        %v652 = vadd.f32 %v599, 1.0
        %v653 = vadd.f32 %v601, 1.0
        %v654 = vadd.f32 %v603, 1.0
        %v655 = vadd.f32 %v605, 1.0
        %v656 = vadd.f32 %v607, 1.0
        %v657 = vadd.f32 %v609, 1.0
        %v658 = vadd.f32 %v611, 1.0
        %v659 = vadd.f32 %v613, 1.0
        %v660 = vadd.f32 %v615, 1.0
        %v661 = vadd.f32 %v617, 1.0
        %v662 = vadd.f32 %v619, 1.0
        %v663 = vadd.f32 %v621, 1.0
        %v664 = vadd.f32 %v623, 1.0
        %v665 = vadd.f32 %v625, 1.0
        %v666 = vadd.f32 %v627, 1.0
        %v667 = vadd.f32 %v629, 1.0
        %v668 = vadd.f32 %v631, 1.0
        %v669 = vadd.f32 %v633, 1.0
        %v670 = vadd.f32 %v635, 1.0
        %v671 = vadd.f32 %v637, 1.0
        %v672 = vadd.f32 %v639, 1.0
        %v673 = vadd.f32 %v641, 1.0
        %v674 = vrcp.pop %v642
        %v675 = vrcp.pop %v643
        %v676 = vrcp.pop %v644
        %v677 = vrcp.pop %v645
        %v678 = vrcp.pop %v646
        %v679 = vrcp.pop %v647
        %v680 = vrcp.pop %v648
        %v681 = vrcp.pop %v649
        %v682 = vrcp.pop %v650
        %v683 = vrcp.pop %v651
        %v684 = vrcp.pop %v652
        %v685 = vrcp.pop %v653
        %v686 = vrcp.pop %v654
        %v687 = vrcp.pop %v655
        %v688 = vrcp.pop %v656
        %v689 = vrcp.pop %v657
        %v690 = vrcp.pop %v658
        %v691 = vrcp.pop %v659
        %v692 = vrcp.pop %v660
        %v693 = vrcp.pop %v661
        %v694 = vrcp.pop %v662
        %v695 = vrcp.pop %v663
        %v696 = vrcp.pop %v664
        %v697 = vrcp.pop %v665
        %v698 = vrcp.pop %v666
        %v699 = vrcp.pop %v667
        %v700 = vrcp.pop %v668
        %v701 = vrcp.pop %v669
        %v702 = vrcp.pop %v670
        %v703 = vrcp.pop %v671
        %v704 = vrcp.pop %v672
        %v705 = vrcp.pop %v673
        %v706 = vmul.f32 %v420, %v674
        %v707 = vmul.f32 %v423, %v675
        %v708 = vmul.f32 %v428, %v676
        %v709 = vmul.f32 %v431, %v677
        %v710 = vmul.f32 %v436, %v678
        %v711 = vmul.f32 %v439, %v679
        %v712 = vmul.f32 %v444, %v680
        %v713 = vmul.f32 %v447, %v681
        %v714 = vmul.f32 %v452, %v682
        %v715 = vmul.f32 %v455, %v683
        %v716 = vmul.f32 %v460, %v684
        %v717 = vmul.f32 %v463, %v685
        %v718 = vmul.f32 %v468, %v686
        %v719 = vmul.f32 %v471, %v687
        %v720 = vmul.f32 %v476, %v688
        %v721 = vmul.f32 %v479, %v689
        %v722 = vmul.f32 %v484, %v690
        %v723 = vmul.f32 %v487, %v691
        %v724 = vmul.f32 %v492, %v692
        %v725 = vmul.f32 %v495, %v693
        %v726 = vmul.f32 %v500, %v694
        %v727 = vmul.f32 %v503, %v695
        %v728 = vmul.f32 %v508, %v696
        %v729 = vmul.f32 %v511, %v697
        %v730 = vmul.f32 %v516, %v698
        %v731 = vmul.f32 %v519, %v699
        %v732 = vmul.f32 %v524, %v700
        %v733 = vmul.f32 %v527, %v701
        %v734 = vmul.f32 %v532, %v702
        %v735 = vmul.f32 %v535, %v703
        %v736 = vmul.f32 %v540, %v704
        %v737 = vmul.f32 %v543, %v705
        %v738 = vpack.c.bf16 %v707, %v706
        %v739 = vpack.c.bf16 %v709, %v708
        %v740 = vpack.c.bf16 %v711, %v710
        %v741 = vpack.c.bf16 %v713, %v712
        %v742 = vpack.c.bf16 %v715, %v714
        %v743 = vpack.c.bf16 %v717, %v716
        %v744 = vpack.c.bf16 %v719, %v718
        %v745 = vpack.c.bf16 %v721, %v720
        %v746 = vpack.c.bf16 %v723, %v722
        %v747 = vpack.c.bf16 %v725, %v724
        %v748 = vpack.c.bf16 %v727, %v726
        %v749 = vpack.c.bf16 %v729, %v728
        %v750 = vpack.c.bf16 %v731, %v730
        %v751 = vpack.c.bf16 %v733, %v732
        %v752 = vpack.c.bf16 %v735, %v734
        %v753 = vpack.c.bf16 %v737, %v736
        %v770 = vunpack.c.l.b16 %v738
        %v771 = vunpack.c.h.b16 %v738
        %v772 = vunpack.c.l.b16 %v739
        %v773 = vunpack.c.h.b16 %v739
        %v774 = vunpack.c.l.b16 %v740
        %v775 = vunpack.c.h.b16 %v740
        %v776 = vunpack.c.l.b16 %v741
        %v777 = vunpack.c.h.b16 %v741
        %v778 = vunpack.c.l.b16 %v742
        %v779 = vunpack.c.h.b16 %v742
        %v780 = vunpack.c.l.b16 %v743
        %v781 = vunpack.c.h.b16 %v743
        %v782 = vunpack.c.l.b16 %v744
        %v783 = vunpack.c.h.b16 %v744
        %v784 = vunpack.c.l.b16 %v745
        %v785 = vunpack.c.h.b16 %v745
        %v786 = vunpack.c.l.b16 %v746
        %v787 = vunpack.c.h.b16 %v746
        %v788 = vunpack.c.l.b16 %v747
        %v789 = vunpack.c.h.b16 %v747
        %v790 = vunpack.c.l.b16 %v748
        %v791 = vunpack.c.h.b16 %v748
        %v792 = vunpack.c.l.b16 %v749
        %v793 = vunpack.c.h.b16 %v749
        %v794 = vunpack.c.l.b16 %v750
        %v795 = vunpack.c.h.b16 %v750
        %v796 = vunpack.c.l.b16 %v751
        %v797 = vunpack.c.h.b16 %v751
        %v798 = vunpack.c.l.b16 %v752
        %v799 = vunpack.c.h.b16 %v752
        %v800 = vunpack.c.l.b16 %v753
        %v801 = vunpack.c.h.b16 %v753
        %v802 = vpack.c.b16 %v770, %v770
        %v803 = vpack.c.b16 %v771, %v771
        %v804 = vpack.c.b16 %v772, %v772
        %v805 = vpack.c.b16 %v773, %v773
        %v806 = vpack.c.b16 %v774, %v774
        %v807 = vpack.c.b16 %v775, %v775
        %v808 = vpack.c.b16 %v776, %v776
        %v809 = vpack.c.b16 %v777, %v777
        %v810 = vpack.c.b16 %v778, %v778
        %v811 = vpack.c.b16 %v779, %v779
        %v812 = vpack.c.b16 %v780, %v780
        %v813 = vpack.c.b16 %v781, %v781
        %v814 = vpack.c.b16 %v782, %v782
        %v815 = vpack.c.b16 %v783, %v783
        %v816 = vpack.c.b16 %v784, %v784
        %v817 = vpack.c.b16 %v785, %v785
        %v818 = vpack.c.b16 %v786, %v786
        %v819 = vpack.c.b16 %v787, %v787
        %v820 = vpack.c.b16 %v788, %v788
        %v821 = vpack.c.b16 %v789, %v789
        %v822 = vpack.c.b16 %v790, %v790
        %v823 = vpack.c.b16 %v791, %v791
        %v824 = vpack.c.b16 %v792, %v792
        %v825 = vpack.c.b16 %v793, %v793
        %v826 = vpack.c.b16 %v794, %v794
        %v827 = vpack.c.b16 %v795, %v795
        %v828 = vpack.c.b16 %v796, %v796
        %v829 = vpack.c.b16 %v797, %v797
        %v830 = vpack.c.b16 %v798, %v798
        %v831 = vpack.c.b16 %v799, %v799
        %v832 = vpack.c.b16 %v800, %v800
        %v833 = vpack.c.b16 %v801, %v801
        %866 = vst [vmem:[%s188] sm:$0xf] %v802
        %867 = vst [vmem:[%s188 + $0x4] sm:$0xf] %v803
        %868 = vst [vmem:[%s188 + $0x8] sm:$0xf] %v804
        %869 = vst [vmem:[%s188 + $0xc] sm:$0xf] %v805
        %870 = vst [vmem:[%s188 + $0x10] sm:$0xf] %v806
        %871 = vst [vmem:[%s188 + $0x14] sm:$0xf] %v807
        %872 = vst [vmem:[%s188 + $0x18] sm:$0xf] %v808
        %873 = vst [vmem:[%s188 + $0x1c] sm:$0xf] %v809
        %874 = vst [vmem:[%s188 + $0x20] sm:$0xf] %v810
        %875 = vst [vmem:[%s188 + $0x24] sm:$0xf] %v811
        %876 = vst [vmem:[%s188 + $0x28] sm:$0xf] %v812
        %877 = vst [vmem:[%s188 + $0x2c] sm:$0xf] %v813
        %878 = vst [vmem:[%s188 + $0x30] sm:$0xf] %v814
        %879 = vst [vmem:[%s188 + $0x34] sm:$0xf] %v815
        %880 = vst [vmem:[%s188 + $0x38] sm:$0xf] %v816
        %881 = vst [vmem:[%s188 + $0x3c] sm:$0xf] %v817
        %882 = vst [vmem:[%s188 + $0x40] sm:$0xf] %v818
        %883 = vst [vmem:[%s188 + $0x44] sm:$0xf] %v819
        %884 = vst [vmem:[%s188 + $0x48] sm:$0xf] %v820
        %885 = vst [vmem:[%s188 + $0x4c] sm:$0xf] %v821
        %886 = vst [vmem:[%s188 + $0x50] sm:$0xf] %v822
        %887 = vst [vmem:[%s188 + $0x54] sm:$0xf] %v823
        %888 = vst [vmem:[%s188 + $0x58] sm:$0xf] %v824
        %889 = vst [vmem:[%s188 + $0x5c] sm:$0xf] %v825
        %890 = vst [vmem:[%s188 + $0x60] sm:$0xf] %v826
        %891 = vst [vmem:[%s188 + $0x64] sm:$0xf] %v827
        %892 = vst [vmem:[%s188 + $0x68] sm:$0xf] %v828
        %893 = vst [vmem:[%s188 + $0x6c] sm:$0xf] %v829
        %894 = vst [vmem:[%s188 + $0x70] sm:$0xf] %v830
        %895 = vst [vmem:[%s188 + $0x74] sm:$0xf] %v831
        %896 = vst [vmem:[%s188 + $0x78] sm:$0xf] %v832
        %897 = vst [vmem:[%s188 + $0x7c] sm:$0xf] %v833
        %s898 = sand.u32 %s109, 1
        %s899 = scalar_lea.sflag [#allocation3], %s898
        %s900 = sand.u32 %s109, 1
        %s901 = smul.addr %s900, 128
        %s902 = scalar_lea.vmem [#allocation2], %s901
        // Predicated region
        $region33: #{tpu_custom_call.1} parent=31 // pred_check
          %p903 = pneg %p119
        $region34: #{tpu_custom_call.1} parent=31 // pred_check_branch
          %905 = sbr.rel (%p903) target = $region36
        $region35: #{tpu_custom_call.1} parent=31 // pred_region
          %s906 = smul.u32 32, %s22
          %s908 = ssub.s32 2048, 2048
          %909 = vsyncadd %s899, %s908
          %s910 = smul.addr %s21, 32
          %s911 = sadd.s32 %s906, %s910
          %s912 = smul.addr %s911, 64
          %s913 = scalar_lea.hbm %s3, %s912
          %s914 = sshll.u32 %s902, 4
          %s915 = int_to_ptr.vmem [resolvable:$true] %s914
          %920 = dma.vmem_to_hbm [thread:$0]  %s915, 2048, %s913, %s899, 64, 64, 4
        $region36: #{tpu_custom_call.1} parent=31 // pred_fallthru
          _
      $region32: #{tpu_custom_call.1} parent=5 // pred_fallthru
        _
      %p921 = scmp.le.s32.totalorder 2, %s12
      // Predicated region
      $region37: #{tpu_custom_call.1} parent=5 // pred_check
        %p922 = pneg %p921
      $region38: #{tpu_custom_call.1} parent=5 // pred_check_branch
        %924 = sbr.rel (%p922) target = $region40
      $region39: #{tpu_custom_call.1} parent=5 // pred_region
        %s925 = ssub.s32 %s12, 2
        // Predicated region
        $region41: #{tpu_custom_call.1} parent=39 // pred_check
          %p926 = pneg %p125
        $region42: #{tpu_custom_call.1} parent=39 // pred_check_branch
          %928 = sbr.rel (%p926) target = $region44
        $region43: #{tpu_custom_call.1} parent=39 // pred_region
          %s929 = sand.u32 %s110, 1
          %s930 = scalar_lea.sflag [#allocation3], %s929
          %s931 = sand.u32 %s110, 1
          %s932 = smul.addr %s931, 128
          %s933 = scalar_lea.vmem [#allocation2], %s932
          %934 = dma.done %s930, 2048
        $region44: #{tpu_custom_call.1} parent=39 // pred_fallthru
          _
      $region40: #{tpu_custom_call.1} parent=5 // pred_fallthru
        _
    $region6: #{tpu_custom_call.1} parent=1 // loop_footer
      %s16 = sadd.s32 1, %s12
    $region7: #{tpu_custom_call.1} parent=1 // loop_footer_branch
      %11 = sbr.rel target = $region3
    $region8: #{tpu_custom_call.1} parent=1 // loop_exit
      _
    %935 = vsyncpa [#allocation3], 1
    %s936 = scalar_lea.sflag [#allocation3], 1
    %937 = vsyncpa %s936, 1

</llo_original>
